<compile_context>
chip_gen: v7x
topology: tpu7x:2x2x1
jax: 0.10.0
libtpu: 0.0.40
codegen_flags: <defaults>
</compile_context>

<pallas_src>
import functools

import jax
import jax.numpy as jnp
from jax import lax
from jax.experimental import pallas as pl
from jax.experimental.pallas import tpu as pltpu

_EPS = 1e-8


def _contrastive_kernel(x_ref, o_ref, *, D, flat, margin_positive,
                        margin_negative, directed):
    # Ref-level member slices (no full-tile f32 copy).
    if flat:
        # x_ref: (TB, 3*D), slice offsets are multiples of 128 -> free views.
        e0 = x_ref[:, 0 * D:1 * D]
        e1 = x_ref[:, 1 * D:2 * D]
        e2 = x_ref[:, 2 * D:3 * D]
    else:
        # x_ref: (TB, 3, D), lane dim stays full/aligned; cheap sublane select.
        e0 = x_ref[:, 0, :]
        e1 = x_ref[:, 1, :]
        e2 = x_ref[:, 2, :]

    def dot(a, b):
        # Multiply in the input dtype (packed bf16 on v6e/v7x), accumulate in f32.
        return jnp.sum(a * b, axis=-1, keepdims=True, dtype=jnp.float32)

    eps2 = jnp.float32(_EPS * _EPS)
    # 1 / max(||e||, eps) == rsqrt(max(sum(e*e), eps^2))   (EUP, own issue slot)
    inv0 = lax.rsqrt(jnp.maximum(dot(e0, e0), eps2))
    inv1 = lax.rsqrt(jnp.maximum(dot(e1, e1), eps2))
    inv2 = lax.rsqrt(jnp.maximum(dot(e2, e2), eps2))

    s01 = dot(e0, e1) * (inv0 * inv1)          # (TB, 1)
    s02 = dot(e0, e2) * (inv0 * inv2)

    hinge = lambda a, b: jnp.maximum(a - b, 0.0)

    if directed:
        losses = (hinge(margin_positive, s01) + hinge(s02, margin_negative)) * 0.5
    else:
        s12 = dot(e1, e2) * (inv1 * inv2)
        losses = (hinge(margin_positive, s01)
                  + hinge(s02, margin_negative)
                  + hinge(s12, margin_negative)) * (1.0 / 3.0)

    # Per-group losses; out-of-bounds rows of a partial last tile are discarded by
    # Pallas's partial-block writeback, so no explicit masking is required.
    o_ref[...] = losses


def _dtype_sublane(dtype):
    itemsize = jnp.dtype(dtype).itemsize
    return max(8, 32 // itemsize)          # 8 rows f32, 16 bf16, 32 int8/fp8


def contrastive_loss(embeddings, *, margin_positive=0.8, margin_negative=0.2,
                     directed=False, block_rows=None):
    """embeddings: (B, 3, D) — B groups of (anchor, positive, negative)."""
    assert embeddings.ndim == 3 and embeddings.shape[1] == 3
    B, _, D = embeddings.shape
    itemsize = jnp.dtype(embeddings.dtype).itemsize
    flat = (D % 128 == 0)

    if flat:
        # (B, 3, D) -> (B, 3*D): contiguous minor-dim merge, no HBM copy.
        x = embeddings.reshape(B, 3 * D)
        padded_row_bytes = 3 * D * itemsize
    else:
        x = embeddings
        # VMEM layout pads the (3, D) minor dims to (8, roundup(D,128)) per row.
        padded_row_bytes = 8 * (-(-D // 128) * 128) * itemsize

    sub = _dtype_sublane(embeddings.dtype)
    if block_rows is None:
        budget = 2 * 1024 * 1024           # ~2 MiB per pipeline buffer
        tb = max(sub, min(1024, budget // max(1, padded_row_bytes)))
        tb = max(sub, (tb // sub) * sub)   # dtype-native sublane alignment
    else:
        tb = int(block_rows)
    if tb >= B:
        tb = B                             # single tile: block == full array dims
    num_tiles = pl.cdiv(B, tb)             # non-divisible grid handled by Pallas

    if flat:
        in_spec = pl.BlockSpec((tb, 3 * D), lambda i: (i, 0))
    else:
        in_spec = pl.BlockSpec((tb, 3, D), lambda i: (i, 0, 0))

    kernel = functools.partial(
        _contrastive_kernel,
        D=D, flat=flat,
        margin_positive=float(margin_positive),
        margin_negative=float(margin_negative),
        directed=bool(directed),
    )

    losses = pl.pallas_call(
        kernel,
        out_shape=jax.ShapeDtypeStruct((B, 1), jnp.float32),
        grid_spec=pltpu.PrefetchScalarGridSpec(
            num_scalar_prefetch=0,
            grid=(num_tiles,),
            in_specs=[in_spec],
            out_specs=pl.BlockSpec((tb, 1), lambda i: (i, 0)),
        ),
        compiler_params=pltpu.CompilerParams(
            dimension_semantics=("parallel",),   # per-tile outputs -> megacore-friendly
            vmem_limit_bytes=32 * 1024 * 1024,
        ),
    )(x)

    # Tiny (B,) reduction + divide-by-B done in plain JAX (pairwise, negligible cost).
    return jnp.mean(losses)


def _reference_loss(embeddings, *, margin_positive=0.8, margin_negative=0.2,
                    directed=False):
    e0, e1, e2 = embeddings[:, 0], embeddings[:, 1], embeddings[:, 2]

    def cos(a, b):
        na = jnp.maximum(jnp.linalg.norm(a, axis=-1), _EPS)
        nb = jnp.maximum(jnp.linalg.norm(b, axis=-1), _EPS)
        return jnp.sum(a * b, axis=-1) / (na * nb)

    s01, s02, s12 = cos(e0, e1), cos(e0, e2), cos(e1, e2)
    hinge = lambda a, b: jnp.maximum(a - b, 0.0)
    if directed:
        losses = (hinge(margin_positive, s01) + hinge(s02, margin_negative)) / 2.0
    else:
        losses = (hinge(margin_positive, s01) + hinge(s02, margin_negative)
                  + hinge(s12, margin_negative)) / 3.0
    return jnp.mean(losses)


if __name__ == "__main__":
    key = jax.random.PRNGKey(0)
    k1, k2, k3 = jax.random.split(key, 3)

    # Case 1: D % 128 != 0 path (D=32), single tile, undirected and directed.
    B, D = 8, 32
    emb = jax.random.normal(k1, (B, 3, D), dtype=jnp.float32)
    loss = contrastive_loss(emb, margin_positive=0.8, margin_negative=0.2,
                            directed=False)
    loss_dir = contrastive_loss(emb, margin_positive=0.8, margin_negative=0.2,
                                directed=True)
    jax.block_until_ready((loss, loss_dir))
    ref = _reference_loss(emb, directed=False)
    ref_dir = _reference_loss(emb, directed=True)
    assert jnp.allclose(loss, ref, atol=1e-5), (loss, ref)
    assert jnp.allclose(loss_dir, ref_dir, atol=1e-5), (loss_dir, ref_dir)

    # Case 2: multi-tile with a non-divisible (partial) last block, no padding copy.
    B2 = 20
    emb2 = jax.random.normal(k2, (B2, 3, D), dtype=jnp.float32)
    loss2 = contrastive_loss(emb2, directed=False, block_rows=8)
    jax.block_until_ready(loss2)
    ref2 = _reference_loss(emb2, directed=False)
    assert jnp.allclose(loss2, ref2, atol=1e-5), (loss2, ref2)

    # Case 3: lane-aligned flat path (D=128), multi-tile, parallel grid.
    B3, D3 = 16, 128
    emb3 = jax.random.normal(k3, (B3, 3, D3), dtype=jnp.float32)
    loss3 = contrastive_loss(emb3, directed=False, block_rows=8)
    jax.block_until_ready(loss3)
    ref3 = _reference_loss(emb3, directed=False)
    assert jnp.allclose(loss3, ref3, atol=1e-5), (loss3, ref3)

    print("KERNEL_OK")
</pallas_src>

<mosaic_0001>
module attributes {stable_mosaic.version = 11 : i64} {
  func.func @_contrastive_kernel(%arg0: i32, %arg1: memref<8x3x32xf32, #tpu.memory_space<vmem>>, %arg2: memref<8x1xf32, #tpu.memory_space<vmem>>) attributes {dimension_semantics = [#tpu.dimension_semantics<parallel>], iteration_bounds = array<i64: 1>, scalar_prefetch = 0 : i64, scratch_operands = 0 : i64, tpu.core_type = #tpu.core_type<tc>, window_params = [{transform_indices = @transform_0, window_bounds = array<i64: 8, 3, 32>}, {transform_indices = @transform_1, window_bounds = array<i64: 8, 1>}]} {
    %c0 = arith.constant 0 : index
    %c0_0 = arith.constant 0 : index
    %c0_1 = arith.constant 0 : index
    %0 = vector.load %arg1[%c0, %c0_0, %c0_1] : memref<8x3x32xf32, #tpu.memory_space<vmem>>, vector<8x1x32xf32>
    %1 = vector.shape_cast %0 : vector<8x1x32xf32> to vector<8x32xf32>
    %c0_2 = arith.constant 0 : index
    %c1 = arith.constant 1 : index
    %c0_3 = arith.constant 0 : index
    %2 = vector.load %arg1[%c0_2, %c1, %c0_3] : memref<8x3x32xf32, #tpu.memory_space<vmem>>, vector<8x1x32xf32>
    %3 = vector.shape_cast %2 : vector<8x1x32xf32> to vector<8x32xf32>
    %c0_4 = arith.constant 0 : index
    %c2 = arith.constant 2 : index
    %c0_5 = arith.constant 0 : index
    %4 = vector.load %arg1[%c0_4, %c2, %c0_5] : memref<8x3x32xf32, #tpu.memory_space<vmem>>, vector<8x1x32xf32>
    %5 = vector.shape_cast %4 : vector<8x1x32xf32> to vector<8x32xf32>
    %6 = arith.mulf %1, %1 : vector<8x32xf32>
    %cst = arith.constant dense<0.000000e+00> : vector<8xf32>
    %7 = vector.multi_reduction <add>, %6, %cst [1] : vector<8x32xf32> to vector<8xf32>
    %8 = vector.shape_cast %7 : vector<8xf32> to vector<8x1xf32>
    %cst_6 = arith.constant 1.000000e-16 : f32
    %9 = vector.broadcast %cst_6 : f32 to vector<8x1xf32>
    %10 = arith.maximumf %8, %9 : vector<8x1xf32>
    %11 = math.rsqrt %10 : vector<8x1xf32>
    %12 = arith.mulf %3, %3 : vector<8x32xf32>
    %cst_7 = arith.constant dense<0.000000e+00> : vector<8xf32>
    %13 = vector.multi_reduction <add>, %12, %cst_7 [1] : vector<8x32xf32> to vector<8xf32>
    %14 = vector.shape_cast %13 : vector<8xf32> to vector<8x1xf32>
    %cst_8 = arith.constant 1.000000e-16 : f32
    %15 = vector.broadcast %cst_8 : f32 to vector<8x1xf32>
    %16 = arith.maximumf %14, %15 : vector<8x1xf32>
    %17 = math.rsqrt %16 : vector<8x1xf32>
    %18 = arith.mulf %5, %5 : vector<8x32xf32>
    %cst_9 = arith.constant dense<0.000000e+00> : vector<8xf32>
    %19 = vector.multi_reduction <add>, %18, %cst_9 [1] : vector<8x32xf32> to vector<8xf32>
    %20 = vector.shape_cast %19 : vector<8xf32> to vector<8x1xf32>
    %cst_10 = arith.constant 1.000000e-16 : f32
    %21 = vector.broadcast %cst_10 : f32 to vector<8x1xf32>
    %22 = arith.maximumf %20, %21 : vector<8x1xf32>
    %23 = math.rsqrt %22 : vector<8x1xf32>
    %24 = arith.mulf %1, %3 : vector<8x32xf32>
    %cst_11 = arith.constant dense<0.000000e+00> : vector<8xf32>
    %25 = vector.multi_reduction <add>, %24, %cst_11 [1] : vector<8x32xf32> to vector<8xf32>
    %26 = vector.shape_cast %25 : vector<8xf32> to vector<8x1xf32>
    %27 = arith.mulf %11, %17 : vector<8x1xf32>
    %28 = arith.mulf %26, %27 : vector<8x1xf32>
    %29 = arith.mulf %1, %5 : vector<8x32xf32>
    %cst_12 = arith.constant dense<0.000000e+00> : vector<8xf32>
    %30 = vector.multi_reduction <add>, %29, %cst_12 [1] : vector<8x32xf32> to vector<8xf32>
    %31 = vector.shape_cast %30 : vector<8xf32> to vector<8x1xf32>
    %32 = arith.mulf %11, %23 : vector<8x1xf32>
    %33 = arith.mulf %31, %32 : vector<8x1xf32>
    %34 = arith.mulf %3, %5 : vector<8x32xf32>
    %cst_13 = arith.constant dense<0.000000e+00> : vector<8xf32>
    %35 = vector.multi_reduction <add>, %34, %cst_13 [1] : vector<8x32xf32> to vector<8xf32>
    %36 = vector.shape_cast %35 : vector<8xf32> to vector<8x1xf32>
    %37 = arith.mulf %17, %23 : vector<8x1xf32>
    %38 = arith.mulf %36, %37 : vector<8x1xf32>
    %cst_14 = arith.constant 8.000000e-01 : f32
    %39 = vector.broadcast %cst_14 : f32 to vector<8x1xf32>
    %40 = arith.subf %39, %28 : vector<8x1xf32>
    %cst_15 = arith.constant 0.000000e+00 : f32
    %41 = vector.broadcast %cst_15 : f32 to vector<8x1xf32>
    %42 = arith.maximumf %40, %41 : vector<8x1xf32>
    %cst_16 = arith.constant 2.000000e-01 : f32
    %43 = vector.broadcast %cst_16 : f32 to vector<8x1xf32>
    %44 = arith.subf %33, %43 : vector<8x1xf32>
    %cst_17 = arith.constant 0.000000e+00 : f32
    %45 = vector.broadcast %cst_17 : f32 to vector<8x1xf32>
    %46 = arith.maximumf %44, %45 : vector<8x1xf32>
    %47 = arith.addf %42, %46 : vector<8x1xf32>
    %cst_18 = arith.constant 2.000000e-01 : f32
    %48 = vector.broadcast %cst_18 : f32 to vector<8x1xf32>
    %49 = arith.subf %38, %48 : vector<8x1xf32>
    %cst_19 = arith.constant 0.000000e+00 : f32
    %50 = vector.broadcast %cst_19 : f32 to vector<8x1xf32>
    %51 = arith.maximumf %49, %50 : vector<8x1xf32>
    %52 = arith.addf %47, %51 : vector<8x1xf32>
    %cst_20 = arith.constant 0.333333343 : f32
    %53 = vector.broadcast %cst_20 : f32 to vector<8x1xf32>
    %54 = arith.mulf %52, %53 : vector<8x1xf32>
    %c0_21 = arith.constant 0 : index
    %c0_22 = arith.constant 0 : index
    %55 = vector.load %arg2[%c0_21, %c0_22] : memref<8x1xf32, #tpu.memory_space<vmem>>, vector<8x1xf32>
    tpu.vector_store %arg2[%c0_21, %c0_22], %54 {strides = array<i32>} : memref<8x1xf32, #tpu.memory_space<vmem>>, vector<8x1xf32>,
    return
  }
  func.func @transform_0(%arg0: i32) -> (i32, i32, i32) {
    %c0_i32 = arith.constant 0 : i32
    %c0_i32_0 = arith.constant 0 : i32
    %c0_i32_1 = arith.constant 0 : i32
    return %arg0, %c0_i32, %c0_i32_0 : i32, i32, i32
  }
  func.func @transform_1(%arg0: i32) -> (i32, i32) {
    %c0_i32 = arith.constant 0 : i32
    %c0_i32_0 = arith.constant 0 : i32
    return %arg0, %c0_i32 : i32, i32
  }
}

</mosaic_0001>

<llo_original>
// kernel: tpu_custom_call.1
$region0: #{tpu_custom_call.1}
  #allocation0 [shape = 'u32[]', space=smem, size = 0x4, offset = 0x4, fixed_abs, tag = 'smem constant byte address 0x4 - core index']
  #allocation1 [shape = 'u32[144,128]{1,0:T(1,128)}', space=vmem, size = 0x12000, scoped, tag = 'internal scratch']
  %s0 = inlined_call_operand.vmem [shape: f32[8,3,32], index: 0, kind: input, shape index: {}]
  %s1 = inlined_call_operand.vmem [shape: f32[8,1], index: 1, kind: output, shape index: {}]
  %s2 = sld [smem:[#allocation0]]
  $region14: #{tpu_custom_call.1} parent=0
    _
  %s4 = ssub.s32 1, %s2
  %s5 = scalar_select 0, %s4, %s2
  // Predicated region
  $region2: #{tpu_custom_call.1} parent=0 // pred_check
    _
  $region3: #{tpu_custom_call.1} parent=0 // pred_check_branch
    %7 = sbr.rel (0) target = $region5
  $region4: #{tpu_custom_call.1} parent=0 // pred_region
    _
  $region5: #{tpu_custom_call.1} parent=0 // pred_fallthru
    _
  %v8 = vld [vmem:[%s0] sm:$0x1]
  %v9 = vld [vmem:[%s0 + $0x4] sm:$0x1]
  %v10 = vld [vmem:[%s0 + $0x8] sm:$0x1]
  %v11 = vld [vmem:[%s0 + $0xc] sm:$0x1]
  %v12 = vld [vmem:[%s0 + $0x10] sm:$0x1]
  %v13 = vld [vmem:[%s0 + $0x14] sm:$0x1]
  %v14 = vld [vmem:[%s0 + $0x18] sm:$0x1]
  %v15 = vld [vmem:[%s0 + $0x1c] sm:$0x1]
  %v16 = vld [vmem:[%s0 + $0x1] sm:$0x1]
  %v17 = vld [vmem:[%s0 + $0x5] sm:$0x1]
  %v18 = vld [vmem:[%s0 + $0x9] sm:$0x1]
  %v19 = vld [vmem:[%s0 + $0xd] sm:$0x1]
  %v20 = vld [vmem:[%s0 + $0x11] sm:$0x1]
  %v21 = vld [vmem:[%s0 + $0x15] sm:$0x1]
  %v22 = vld [vmem:[%s0 + $0x19] sm:$0x1]
  %v23 = vld [vmem:[%s0 + $0x1d] sm:$0x1]
  %v24 = vld [vmem:[%s0 + $0x2] sm:$0x1]
  %v25 = vld [vmem:[%s0 + $0x6] sm:$0x1]
  %v26 = vld [vmem:[%s0 + $0xa] sm:$0x1]
  %v27 = vld [vmem:[%s0 + $0xe] sm:$0x1]
  %v28 = vld [vmem:[%s0 + $0x12] sm:$0x1]
  %v29 = vld [vmem:[%s0 + $0x16] sm:$0x1]
  %v30 = vld [vmem:[%s0 + $0x1a] sm:$0x1]
  %v31 = vld [vmem:[%s0 + $0x1e] sm:$0x1]
  %v32 = vmul.f32 %v8, %v8
  %v33 = vmul.f32 %v9, %v9
  %v34 = vmul.f32 %v10, %v10
  %v35 = vmul.f32 %v11, %v11
  %v36 = vmul.f32 %v12, %v12
  %v37 = vmul.f32 %v13, %v13
  %v38 = vmul.f32 %v14, %v14
  %v39 = vmul.f32 %v15, %v15
  %v48 = vrot.slane %v33, 7
  %vm49 = vcmask 1041409
  %v50 = vsel %vm49, %v48, %v32
  %v51 = vrot.slane %v34, 6
  %vm52 = vcmask 1042434
  %v53 = vsel %vm52, %v51, %v50
  %v54 = vrot.slane %v35, 5
  %vm55 = vcmask 1043459
  %v56 = vsel %vm55, %v54, %v53
  %v57 = vrot.slane %v36, 4
  %vm58 = vcmask 1044484
  %v59 = vsel %vm58, %v57, %v56
  %v60 = vrot.slane %v37, 3
  %vm61 = vcmask 1045509
  %v62 = vsel %vm61, %v60, %v59
  %v63 = vrot.slane %v38, 2
  %vm64 = vcmask 1046534
  %v65 = vsel %vm64, %v63, %v62
  %v66 = vrot.slane %v39, 1
  %vm67 = vcmask 1047559
  %v68 = vsel %vm67, %v66, %v65
  %vm70 = vcmask 261120
  %v71 = vsel %vm70, %v68, 0.0
  %72 = vadd.xlane.f32.xlu0 %v71
  %v73 = vpop.xlane.xlu0 %72
  %v74 = vmax.f32 %v73, 1e-16
  %v75 = vrsqrt.pop %v74
  %v76 = vmul.f32 %v16, %v16
  %v77 = vmul.f32 %v17, %v17
  %v78 = vmul.f32 %v18, %v18
  %v79 = vmul.f32 %v19, %v19
  %v80 = vmul.f32 %v20, %v20
  %v81 = vmul.f32 %v21, %v21
  %v82 = vmul.f32 %v22, %v22
  %v83 = vmul.f32 %v23, %v23
  %v92 = vrot.slane %v77, 7
  %v93 = vsel %vm49, %v92, %v76
  %v94 = vrot.slane %v78, 6
  %v95 = vsel %vm52, %v94, %v93
  %v96 = vrot.slane %v79, 5
  %v97 = vsel %vm55, %v96, %v95
  %v98 = vrot.slane %v80, 4
  %v99 = vsel %vm58, %v98, %v97
  %v100 = vrot.slane %v81, 3
  %v101 = vsel %vm61, %v100, %v99
  %v102 = vrot.slane %v82, 2
  %v103 = vsel %vm64, %v102, %v101
  %v104 = vrot.slane %v83, 1
  %v105 = vsel %vm67, %v104, %v103
  %v107 = vsel %vm70, %v105, 0.0
  %108 = vadd.xlane.f32.xlu0 %v107
  %v109 = vpop.xlane.xlu0 %108
  %v110 = vmax.f32 %v109, 1e-16
  %v111 = vrsqrt.pop %v110
  %v112 = vmul.f32 %v24, %v24
  %v113 = vmul.f32 %v25, %v25
  %v114 = vmul.f32 %v26, %v26
  %v115 = vmul.f32 %v27, %v27
  %v116 = vmul.f32 %v28, %v28
  %v117 = vmul.f32 %v29, %v29
  %v118 = vmul.f32 %v30, %v30
  %v119 = vmul.f32 %v31, %v31
  %v128 = vrot.slane %v113, 7
  %v129 = vsel %vm49, %v128, %v112
  %v130 = vrot.slane %v114, 6
  %v131 = vsel %vm52, %v130, %v129
  %v132 = vrot.slane %v115, 5
  %v133 = vsel %vm55, %v132, %v131
  %v134 = vrot.slane %v116, 4
  %v135 = vsel %vm58, %v134, %v133
  %v136 = vrot.slane %v117, 3
  %v137 = vsel %vm61, %v136, %v135
  %v138 = vrot.slane %v118, 2
  %v139 = vsel %vm64, %v138, %v137
  %v140 = vrot.slane %v119, 1
  %v141 = vsel %vm67, %v140, %v139
  %v143 = vsel %vm70, %v141, 0.0
  %144 = vadd.xlane.f32.xlu0 %v143
  %v145 = vpop.xlane.xlu0 %144
  %v146 = vmax.f32 %v145, 1e-16
  %v147 = vrsqrt.pop %v146
  %v148 = vmul.f32 %v8, %v16
  %v149 = vmul.f32 %v9, %v17
  %v150 = vmul.f32 %v10, %v18
  %v151 = vmul.f32 %v11, %v19
  %v152 = vmul.f32 %v12, %v20
  %v153 = vmul.f32 %v13, %v21
  %v154 = vmul.f32 %v14, %v22
  %v155 = vmul.f32 %v15, %v23
  %v164 = vrot.slane %v149, 7
  %v165 = vsel %vm49, %v164, %v148
  %v166 = vrot.slane %v150, 6
  %v167 = vsel %vm52, %v166, %v165
  %v168 = vrot.slane %v151, 5
  %v169 = vsel %vm55, %v168, %v167
  %v170 = vrot.slane %v152, 4
  %v171 = vsel %vm58, %v170, %v169
  %v172 = vrot.slane %v153, 3
  %v173 = vsel %vm61, %v172, %v171
  %v174 = vrot.slane %v154, 2
  %v175 = vsel %vm64, %v174, %v173
  %v176 = vrot.slane %v155, 1
  %v177 = vsel %vm67, %v176, %v175
  %v179 = vsel %vm70, %v177, 0.0
  %180 = vadd.xlane.f32.xlu0 %v179
  %v181 = vpop.xlane.xlu0 %180
  %v182 = vmul.f32 %v75, %v111
  %v183 = vmul.f32 %v181, %v182
  %v184 = vmul.f32 %v8, %v24
  %v185 = vmul.f32 %v9, %v25
  %v186 = vmul.f32 %v10, %v26
  %v187 = vmul.f32 %v11, %v27
  %v188 = vmul.f32 %v12, %v28
  %v189 = vmul.f32 %v13, %v29
  %v190 = vmul.f32 %v14, %v30
  %v191 = vmul.f32 %v15, %v31
  %v200 = vrot.slane %v185, 7
  %v201 = vsel %vm49, %v200, %v184
  %v202 = vrot.slane %v186, 6
  %v203 = vsel %vm52, %v202, %v201
  %v204 = vrot.slane %v187, 5
  %v205 = vsel %vm55, %v204, %v203
  %v206 = vrot.slane %v188, 4
  %v207 = vsel %vm58, %v206, %v205
  %v208 = vrot.slane %v189, 3
  %v209 = vsel %vm61, %v208, %v207
  %v210 = vrot.slane %v190, 2
  %v211 = vsel %vm64, %v210, %v209
  %v212 = vrot.slane %v191, 1
  %v213 = vsel %vm67, %v212, %v211
  %v215 = vsel %vm70, %v213, 0.0
  %216 = vadd.xlane.f32.xlu0 %v215
  %v217 = vpop.xlane.xlu0 %216
  %v218 = vmul.f32 %v75, %v147
  %v219 = vmul.f32 %v217, %v218
  %v220 = vmul.f32 %v16, %v24
  %v221 = vmul.f32 %v17, %v25
  %v222 = vmul.f32 %v18, %v26
  %v223 = vmul.f32 %v19, %v27
  %v224 = vmul.f32 %v20, %v28
  %v225 = vmul.f32 %v21, %v29
  %v226 = vmul.f32 %v22, %v30
  %v227 = vmul.f32 %v23, %v31
  %v236 = vrot.slane %v221, 7
  %v237 = vsel %vm49, %v236, %v220
  %v238 = vrot.slane %v222, 6
  %v239 = vsel %vm52, %v238, %v237
  %v240 = vrot.slane %v223, 5
  %v241 = vsel %vm55, %v240, %v239
  %v242 = vrot.slane %v224, 4
  %v243 = vsel %vm58, %v242, %v241
  %v244 = vrot.slane %v225, 3
  %v245 = vsel %vm61, %v244, %v243
  %v246 = vrot.slane %v226, 2
  %v247 = vsel %vm64, %v246, %v245
  %v248 = vrot.slane %v227, 1
  %v249 = vsel %vm67, %v248, %v247
  %v251 = vsel %vm70, %v249, 0.0
  %252 = vadd.xlane.f32.xlu0 %v251
  %v253 = vpop.xlane.xlu0 %252
  %v254 = vmul.f32 %v111, %v147
  %v255 = vmul.f32 %v253, %v254
  %v256 = vsub.f32 0.8, %v183
  %v257 = vmax.f32 %v256, 0.0
  %v258 = vsub.f32 %v219, 0.2
  %v259 = vmax.f32 %v258, 0.0
  %v260 = vadd.f32 %v257, %v259
  %v261 = vsub.f32 %v255, 0.2
  %v262 = vmax.f32 %v261, 0.0
  %v263 = vadd.f32 %v260, %v262
  %v264 = vmul.f32 %v263, 0.33333334
  %vm265 = vcmask 7168
  %266 = vst.msk [vmem:[%s1] sm:$0xff] %vm265, %v264
  // Predicated region
  $region6: #{tpu_custom_call.1} parent=0 // pred_check
    _
  $region7: #{tpu_custom_call.1} parent=0 // pred_check_branch
    %268 = sbr.rel (0) target = $region9
  $region8: #{tpu_custom_call.1} parent=0 // pred_region
    _
  $region9: #{tpu_custom_call.1} parent=0 // pred_fallthru
    _
  // Predicated region
  $region10: #{tpu_custom_call.1} parent=0 // pred_check
    _
  $region11: #{tpu_custom_call.1} parent=0 // pred_check_branch
    %270 = sbr.rel (0) target = $region13
  $region12: #{tpu_custom_call.1} parent=0 // pred_region
    _
  $region13: #{tpu_custom_call.1} parent=0 // pred_fallthru
    _

</llo_original>
